<compile_context>
chip_gen: v6e
topology: v6e:2x2x1
jax: 0.10.0
libtpu: 0.0.40
codegen_flags: <defaults>
</compile_context>

<pallas_src>
import jax
import jax.numpy as jnp
import numpy as np
from jax import lax
from jax.experimental import pallas as pl
from jax.experimental.pallas import tpu as pltpu

BN_EPS = 1e-5
LANE = 128


def _round_up(x, m):
    return (x + m - 1) // m * m


# -----------------------------------------------------------------------------
# Kernel 1: per-edge messages (edge_fc + u_mul_e + sum over in_neigh) fused into
#           one K = in_neigh*edge_dim matmul, then segmented sum over destination
#           nodes via a per-chunk one-hot matmul ('sum' aggregator).
# Grid: (node_tiles "parallel", edge chunks "arbitrary").
# -----------------------------------------------------------------------------
def edge_agg_kernel(sched_ref,   # SMEM (NT*C,) int32        [scalar prefetch: edge-tile idx per (i,c)]
                    x_ref,       # VMEM (TE, K) bf16          fused h_src (x) edge_feat rows, sorted by dst
                    dst_ref,     # VMEM (1, 1, TE) int32      dst node ids (sentinel -1 on padding)
                    w_edge_ref,  # VMEM (K, O_pad) bf16       grid-invariant flattened edge_fc weight
                    neigh_ref,   # OUT  (TN_AGG, O_pad) bf16  node-tile block of the aggregated neigh
                    acc_ref):    # scratch VMEM (TN_AGG, O_pad) f32
    i = pl.program_id(0)          # node tile
    c = pl.program_id(1)          # edge chunk within this node tile

    @pl.when(c == 0)
    def _init():
        acc_ref[...] = jnp.zeros_like(acc_ref)

    # Messages for every edge in this chunk: one MXU matmul, K = in_neigh * edge_dim.
    msg = jnp.dot(x_ref[...], w_edge_ref[...], preferred_element_type=jnp.float32)  # (TE, O_pad)

    # Segmented sum onto this node tile: one-hot (TN, TE) built on the VPU from the
    # lane-dense dst row, contracted on the MXU. Edges of other tiles / padding (-1)
    # never match -> contribute nothing.
    tn = acc_ref.shape[0]
    te = x_ref.shape[0]
    node_ids = i * tn + lax.broadcasted_iota(jnp.int32, (tn, te), 0)
    onehot = (dst_ref[0] == node_ids).astype(jnp.bfloat16)                           # (TN, TE)
    acc_ref[...] += jnp.dot(onehot, msg.astype(jnp.bfloat16),
                            preferred_element_type=jnp.float32)

    @pl.when(c == pl.num_programs(1) - 1)
    def _store():
        neigh_ref[...] = acc_ref[...].astype(neigh_ref.dtype)


# -----------------------------------------------------------------------------
# Kernel 2: node-side path — fc_self / fc_neigh (BN folded into scale+shift),
#           ReLUs, and row L2 normalization.  Grid: node tiles ("parallel").
# -----------------------------------------------------------------------------
def node_kernel(h_self_ref,       # (TN, I_s)    bf16
                neigh_ref,        # (TN, O_pad)  bf16   (straight from kernel 1, no XLA cast)
                w_self_ref,       # (I_s, O_pad) bf16   grid-invariant (BN scale folded in)
                w_neigh_ref,      # (O_pad,O_pad)bf16   grid-invariant (BN scale folded in)
                shift_self_ref,   # (1, O_pad)   f32    grid-invariant (BN shift)
                shift_neigh_ref,  # (1, O_pad)   f32    grid-invariant (BN shift)
                out_ref):         # (TN, O_pad)  f32
    a = jnp.dot(h_self_ref[...], w_self_ref[...], preferred_element_type=jnp.float32)
    a = jnp.maximum(a + shift_self_ref[...], 0.0)
    b = jnp.dot(neigh_ref[...], w_neigh_ref[...], preferred_element_type=jnp.float32)
    b = jnp.maximum(b + shift_neigh_ref[...], 0.0)
    z = jnp.maximum(a + b, 0.0)

    # Row-wise L2 normalization with zero-norm guard (rsqrt -> EUP).
    ssq = jnp.sum(z * z, axis=1, keepdims=True)
    inv = jnp.where(ssq > 0.0, lax.rsqrt(jnp.maximum(ssq, 1e-30)), 1.0)
    out_ref[...] = z * inv


def conv_layer_forward(src, dst, h_neigh, h_self, edge_feat, params, num_nodes):
    """Glue: sort/gather/pad/layout (host+XLA), graph math + dense math in Pallas."""
    E = int(src.shape[0])
    n_in = h_neigh.shape[1]
    n_self = h_self.shape[1]
    d_e = edge_feat.shape[1]
    n_out = params["w_self"].shape[0]
    k_dim = n_in * d_e

    f32, bf16 = jnp.float32, jnp.bfloat16
    o_pad = _round_up(n_out, LANE)                       # lane-dense feature dim (keep 128-wide)

    # ---- node tiling (edge-kernel aggregation tiles + node-kernel tiles) ----
    if num_nodes <= 1024:
        tn_agg = _round_up(num_nodes, 8)
        tn_out = tn_agg
        n_pad = tn_agg
    else:
        tn_agg, tn_out = 256, 1024                       # tn_agg | tn_out | n_pad
        n_pad = _round_up(num_nodes, 1024)
    nt = n_pad // tn_agg

    te = min(512, _round_up(max(E, 1), 8))               # edge tile
    e_pad = _round_up(max(E, 1), te)
    et_real = e_pad // te
    dummy_tile = et_real                                  # all-sentinel edge tile for padding chunks
    et_total = et_real + 1

    # ---- host-side schedule: sort edges by destination, bucket into node tiles ----
    src_np = np.asarray(src).astype(np.int64)
    dst_np = np.asarray(dst).astype(np.int64)
    order = np.argsort(dst_np, kind="stable")
    dst_s = dst_np[order]

    dst_sorted = np.full((et_total * te,), -1, dtype=np.int32)   # -1 never matches a node id
    dst_sorted[:E] = dst_s

    starts = np.searchsorted(dst_s, np.arange(nt) * tn_agg, side="left")
    ends = np.searchsorted(dst_s, (np.arange(nt) + 1) * tn_agg, side="left")
    t_lo = starts // te
    t_hi = np.where(ends > starts, (ends - 1) // te + 1, t_lo)   # exclusive edge-tile range
    n_chunks = np.maximum(t_hi - t_lo, 1)                        # >=1 so every out block is written
    c_max = int(n_chunks.max())

    sched_np = np.full((nt, c_max), dummy_tile, dtype=np.int32)
    for i in range(nt):
        cnt = int(t_hi[i] - t_lo[i])
        if cnt > 0:
            sched_np[i, :cnt] = np.arange(int(t_lo[i]), int(t_hi[i]), dtype=np.int32)
    sched = jnp.asarray(sched_np.reshape(-1))                    # (NT*C,) int32, SMEM via prefetch

    # ---- edge-side operands (sorted-by-dst, fused outer-product input, zero-padded) ----
    order_j = jnp.asarray(order.astype(np.int32))
    src_sorted = jnp.asarray(src_np[order].astype(np.int32))
    h_src = jnp.take(h_neigh, src_sorted, axis=0).astype(f32)                 # (E, I_n)
    ef_sorted = jnp.take(edge_feat, order_j, axis=0).astype(f32)              # (E, D_e)
    x = (h_src[:, :, None] * ef_sorted[:, None, :]).reshape(E, k_dim)         # X[e,(i,d)]
    x = jnp.pad(x, ((0, et_total * te - E), (0, 0))).astype(bf16)             # zeros: pad + dummy tile
    dst_tiles = jnp.asarray(dst_sorted).reshape(et_total, 1, te)              # (ET+1, 1, TE) int32

    # edge_fc weight -> (I_n*D_e, O_pad): msg[e,o] = sum_{i,d} X[e,(i,d)] * W_flat[(i,d),o]
    w_e = params["w_edge"].reshape(n_in, n_out, d_e).transpose(0, 2, 1).reshape(k_dim, n_out)
    w_e = jnp.pad(w_e, ((0, 0), (0, o_pad - n_out))).astype(bf16)             # (K, O_pad)

    neigh = pl.pallas_call(
        edge_agg_kernel,
        out_shape=jax.ShapeDtypeStruct((n_pad, o_pad), bf16),
        grid_spec=pltpu.PrefetchScalarGridSpec(
            num_scalar_prefetch=1,
            grid=(nt, c_max),
            in_specs=[
                pl.BlockSpec((te, k_dim), lambda i, c, s: (s[i * c_max + c], 0)),
                pl.BlockSpec((1, 1, te), lambda i, c, s: (s[i * c_max + c], 0, 0)),
                pl.BlockSpec((k_dim, o_pad), lambda i, c, s: (0, 0)),          # resident weight
            ],
            out_specs=pl.BlockSpec((tn_agg, o_pad), lambda i, c, s: (i, 0)),   # node-tiled output
            scratch_shapes=[pltpu.VMEM((tn_agg, o_pad), f32)],
        ),
        compiler_params=pltpu.CompilerParams(
            dimension_semantics=("parallel", "arbitrary"),
        ),
    )(sched, x, dst_tiles, w_e)                                                # (N_pad, O_pad) bf16

    # ---- node-side: fold eval-mode BatchNorm into weight scale + bias shift ----
    def fold_bn(w, bn):           # w: (out, in) PyTorch layout; bn rows [gamma, beta, mean, var]
        g, b, mu, var = bn[0], bn[1], bn[2], bn[3]
        s = g / jnp.sqrt(var + BN_EPS)
        return (w * s[:, None]).T, b - mu * s          # (in, out), (out,)

    w_self_eff, shift_self = fold_bn(params["w_self"], params["bn_self"])
    w_neigh_eff, shift_neigh = fold_bn(params["w_neigh"], params["bn_neigh"])

    w_self_eff = jnp.pad(w_self_eff, ((0, 0), (0, o_pad - n_out))).astype(bf16)          # (I_s,O_pad)
    w_neigh_eff = jnp.pad(w_neigh_eff, ((0, o_pad - n_out), (0, o_pad - n_out))).astype(bf16)
    shift_self = jnp.pad(shift_self, (0, o_pad - n_out)).reshape(1, o_pad).astype(f32)
    shift_neigh = jnp.pad(shift_neigh, (0, o_pad - n_out)).reshape(1, o_pad).astype(f32)

    h_self_p = jnp.pad(h_self, ((0, n_pad - num_nodes), (0, 0))).astype(bf16)            # (N_pad,I_s)

    z = pl.pallas_call(
        node_kernel,
        out_shape=jax.ShapeDtypeStruct((n_pad, o_pad), f32),
        grid_spec=pltpu.PrefetchScalarGridSpec(
            num_scalar_prefetch=0,
            grid=(n_pad // tn_out,),
            in_specs=[
                pl.BlockSpec((tn_out, n_self), lambda i: (i, 0)),
                pl.BlockSpec((tn_out, o_pad), lambda i: (i, 0)),
                pl.BlockSpec((n_self, o_pad), lambda i: (0, 0)),   # grid-invariant weights/shifts
                pl.BlockSpec((o_pad, o_pad), lambda i: (0, 0)),
                pl.BlockSpec((1, o_pad), lambda i: (0, 0)),
                pl.BlockSpec((1, o_pad), lambda i: (0, 0)),
            ],
            out_specs=pl.BlockSpec((tn_out, o_pad), lambda i: (i, 0)),  # lane-dense output tiles
        ),
        compiler_params=pltpu.CompilerParams(dimension_semantics=("parallel",)),
    )(h_self_p, neigh, w_self_eff, w_neigh_eff, shift_self, shift_neigh)

    return z[:num_nodes, :n_out]


def reference_forward(src, dst, h_neigh, h_self, edge_feat, params, num_nodes):
    """Pure-JAX reference mirroring the PyTorch forward (inference, sum aggregator)."""
    n_out = params["w_self"].shape[0]
    n_in = h_neigh.shape[1]
    ew = (edge_feat @ params["w_edge"].T).reshape(-1, n_in, n_out)        # (E, I_n, O)
    m = h_neigh[src][:, :, None] * ew                                     # u_mul_e
    neigh = jax.ops.segment_sum(m, dst, num_segments=num_nodes)           # fn.sum
    neigh = neigh.sum(axis=1)                                             # .sum(dim=1)

    def bn_relu(x, p):
        g, b, mu, vr = p[0], p[1], p[2], p[3]
        return jnp.maximum((x - mu) / jnp.sqrt(vr + BN_EPS) * g + b, 0.0)

    a = bn_relu(h_self @ params["w_self"].T, params["bn_self"])
    b = bn_relu(neigh @ params["w_neigh"].T, params["bn_neigh"])
    z = jnp.maximum(a + b, 0.0)
    nrm = jnp.linalg.norm(z, axis=1, keepdims=True)
    nrm = jnp.where(nrm == 0.0, 1.0, nrm)
    return z / nrm


if __name__ == "__main__":
    key = jax.random.PRNGKey(0)
    N_NODES, N_EDGES = 8, 16
    IN_NEIGH, IN_SELF, OUT_FEATS, EDGE_DIM = 4, 6, 16, 8

    ks = jax.random.split(key, 8)
    src = jax.random.randint(ks[0], (N_EDGES,), 0, N_NODES)
    dst = jax.random.randint(ks[1], (N_EDGES,), 0, N_NODES)
    h_neigh = jax.random.normal(ks[2], (N_NODES, IN_NEIGH), jnp.float32)
    h_self = jax.random.normal(ks[3], (N_NODES, IN_SELF), jnp.float32)
    edge_feat = jax.random.normal(ks[4], (N_EDGES, EDGE_DIM), jnp.float32)

    # Deterministic parameter init mimicking the module's reset_parameters():
    #   fc_self[0].weight, edge_fc[0].weight : xavier_uniform (gain = sqrt(2) for relu)
    #   fc_neigh[0].weight                   : PyTorch Linear default (uniform +-1/sqrt(fan_in))
    gain = float(np.sqrt(2.0))

    def xavier(k, shape):  # shape = (fan_out, fan_in), PyTorch weight convention
        fan_out, fan_in = shape
        a = gain * np.sqrt(6.0 / (fan_in + fan_out))
        return jax.random.uniform(k, shape, jnp.float32, -a, a)

    def linear_default(k, shape):
        bound = 1.0 / np.sqrt(shape[1])
        return jax.random.uniform(k, shape, jnp.float32, -bound, bound)

    bn_init = jnp.stack([jnp.ones(OUT_FEATS), jnp.zeros(OUT_FEATS),
                         jnp.zeros(OUT_FEATS), jnp.ones(OUT_FEATS)]).astype(jnp.float32)

    params = {
        "w_self": xavier(ks[5], (OUT_FEATS, IN_SELF)),
        "w_neigh": linear_default(ks[6], (OUT_FEATS, OUT_FEATS)),
        "w_edge": xavier(ks[7], (IN_NEIGH * OUT_FEATS, EDGE_DIM)),
        "bn_self": bn_init,
        "bn_neigh": bn_init,
    }

    out = conv_layer_forward(src, dst, h_neigh, h_self, edge_feat, params, N_NODES)
    out = jax.block_until_ready(out)

    ref = reference_forward(src, dst, h_neigh, h_self, edge_feat, params, N_NODES)
    assert out.shape == (N_NODES, OUT_FEATS)
    assert bool(jnp.allclose(out, ref, atol=5e-2, rtol=5e-2)), "Pallas kernel mismatch vs JAX reference"

    print("KERNEL_OK")
</pallas_src>

<mosaic_0001>
module attributes {stable_mosaic.version = 11 : i64} {
  func.func @edge_agg_kernel(%arg0: i32, %arg1: i32, %arg2: memref<1xi32, #tpu.memory_space<smem>>, %arg3: memref<16x32xbf16, #tpu.memory_space<vmem>>, %arg4: memref<1x1x16xi32, #tpu.memory_space<vmem>>, %arg5: memref<32x128xbf16, #tpu.memory_space<vmem>>, %arg6: memref<8x128xbf16, #tpu.memory_space<vmem>>, %arg7: memref<8x128xf32, #tpu.memory_space<vmem>>) attributes {dimension_semantics = [#tpu.dimension_semantics<parallel>, #tpu.dimension_semantics<arbitrary>], iteration_bounds = array<i64: 1, 1>, scalar_prefetch = 1 : i64, scratch_operands = 1 : i64, tpu.core_type = #tpu.core_type<tc>, window_params = [{transform_indices = @transform_0, window_bounds = array<i64: 16, 32>}, {transform_indices = @transform_1, window_bounds = array<i64: 1, 1, 16>}, {pipeline_mode = #tpu.pipeline_mode<synchronous>, transform_indices = @transform_2, window_bounds = array<i64: 32, 128>}, {transform_indices = @transform_3, window_bounds = array<i64: 8, 128>}]} {
    %c0_i32 = arith.constant 0 : i32
    %0 = arith.cmpi eq, %arg1, %c0_i32 : i32
    %1 = arith.extui %0 : i1 to i32
    %c0_i32_0 = arith.constant 0 : i32
    %2 = arith.cmpi ne, %1, %c0_i32_0 : i32
    scf.if %2 {
      %cst_14 = arith.constant 0.000000e+00 : f32
      %25 = vector.broadcast %cst_14 : f32 to vector<8x128xf32>
      %c0_15 = arith.constant 0 : index
      %c0_16 = arith.constant 0 : index
      %26 = vector.load %arg7[%c0_15, %c0_16] : memref<8x128xf32, #tpu.memory_space<vmem>>, vector<8x128xf32>
      tpu.vector_store %arg7[%c0_15, %c0_16], %25 {strides = array<i32>} : memref<8x128xf32, #tpu.memory_space<vmem>>, vector<8x128xf32>,
    } else {
    }
    %c0 = arith.constant 0 : index
    %c0_1 = arith.constant 0 : index
    %3 = vector.load %arg3[%c0, %c0_1] : memref<16x32xbf16, #tpu.memory_space<vmem>>, vector<16x32xbf16>
    %c0_2 = arith.constant 0 : index
    %c0_3 = arith.constant 0 : index
    %4 = vector.load %arg5[%c0_2, %c0_3] : memref<32x128xbf16, #tpu.memory_space<vmem>>, vector<32x128xbf16>
    %cst = arith.constant dense<0.000000e+00> : vector<16x128xf32>
    %5 = tpu.matmul %3, %4, %cst {dimension_numbers = #tpu.dot_dimension_numbers<[1], [0], [0], [1], [0, 0, 1, 1], [], []>} : vector<16x32xbf16>, vector<32x128xbf16>, vector<16x128xf32> -> vector<16x128xf32>
    %c8_i32 = arith.constant 8 : i32
    %6 = arith.muli %arg0, %c8_i32 : i32
    %7 = tpu.iota {dimensions = array<i32: 0>} : vector<8x16xi32>
    %8 = vector.broadcast %6 : i32 to vector<8x16xi32>
    %9 = arith.addi %8, %7 : vector<8x16xi32>
    %c0_4 = arith.constant 0 : index
    %c0_5 = arith.constant 0 : index
    %c0_6 = arith.constant 0 : index
    %10 = vector.load %arg4[%c0_4, %c0_5, %c0_6] : memref<1x1x16xi32, #tpu.memory_space<vmem>>, vector<1x1x16xi32>
    %11 = vector.shape_cast %10 : vector<1x1x16xi32> to vector<1x16xi32>
    %12 = vector.broadcast %11 : vector<1x16xi32> to vector<8x16xi32>
    %13 = arith.cmpi eq, %12, %9 : vector<8x16xi32>
    %14 = arith.extui %13 : vector<8x16xi1> to vector<8x16xi32>
    %15 = arith.sitofp %14 : vector<8x16xi32> to vector<8x16xf32>
    %16 = arith.truncf %15 : vector<8x16xf32> to vector<8x16xbf16>
    %c0_7 = arith.constant 0 : index
    %c0_8 = arith.constant 0 : index
    %17 = vector.load %arg7[%c0_7, %c0_8] : memref<8x128xf32, #tpu.memory_space<vmem>>, vector<8x128xf32>
    %18 = arith.truncf %5 : vector<16x128xf32> to vector<16x128xbf16>
    %cst_9 = arith.constant dense<0.000000e+00> : vector<8x128xf32>
    %19 = tpu.matmul %16, %18, %cst_9 {dimension_numbers = #tpu.dot_dimension_numbers<[1], [0], [0], [1], [0, 0, 1, 1], [], []>} : vector<8x16xbf16>, vector<16x128xbf16>, vector<8x128xf32> -> vector<8x128xf32>
    %20 = arith.addf %17, %19 : vector<8x128xf32>
    %c0_10 = arith.constant 0 : index
    %c0_11 = arith.constant 0 : index
    %21 = vector.load %arg7[%c0_10, %c0_11] : memref<8x128xf32, #tpu.memory_space<vmem>>, vector<8x128xf32>
    tpu.vector_store %arg7[%c0_10, %c0_11], %20 {strides = array<i32>} : memref<8x128xf32, #tpu.memory_space<vmem>>, vector<8x128xf32>,
    %c0_i32_12 = arith.constant 0 : i32
    %22 = arith.cmpi eq, %arg1, %c0_i32_12 : i32
    %23 = arith.extui %22 : i1 to i32
    %c0_i32_13 = arith.constant 0 : i32
    %24 = arith.cmpi ne, %23, %c0_i32_13 : i32
    scf.if %24 {
      %c0_14 = arith.constant 0 : index
      %c0_15 = arith.constant 0 : index
      %25 = vector.load %arg7[%c0_14, %c0_15] : memref<8x128xf32, #tpu.memory_space<vmem>>, vector<8x128xf32>
      %26 = arith.truncf %25 : vector<8x128xf32> to vector<8x128xbf16>
      %c0_16 = arith.constant 0 : index
      %c0_17 = arith.constant 0 : index
      %27 = vector.load %arg6[%c0_16, %c0_17] : memref<8x128xbf16, #tpu.memory_space<vmem>>, vector<8x128xbf16>
      tpu.vector_store %arg6[%c0_16, %c0_17], %26 {strides = array<i32>} : memref<8x128xbf16, #tpu.memory_space<vmem>>, vector<8x128xbf16>,
    } else {
    }
    return
  }
  func.func @transform_0(%arg0: i32, %arg1: i32, %arg2: memref<1xi32, #tpu.memory_space<smem>>) -> (i32, i32) {
    %c1_i32 = arith.constant 1 : i32
    %0 = arith.muli %arg0, %c1_i32 : i32
    %1 = arith.addi %0, %arg1 : i32
    %2 = arith.index_cast %1 : i32 to index
    %3 = memref.load %arg2[%2] : memref<1xi32, #tpu.memory_space<smem>>
    %c0_i32 = arith.constant 0 : i32
    %c0_i32_0 = arith.constant 0 : i32
    return %3, %c0_i32 : i32, i32
  }
  func.func @transform_1(%arg0: i32, %arg1: i32, %arg2: memref<1xi32, #tpu.memory_space<smem>>) -> (i32, i32, i32) {
    %c1_i32 = arith.constant 1 : i32
    %0 = arith.muli %arg0, %c1_i32 : i32
    %1 = arith.addi %0, %arg1 : i32
    %2 = arith.index_cast %1 : i32 to index
    %3 = memref.load %arg2[%2] : memref<1xi32, #tpu.memory_space<smem>>
    %c0_i32 = arith.constant 0 : i32
    %c0_i32_0 = arith.constant 0 : i32
    %c0_i32_1 = arith.constant 0 : i32
    return %3, %c0_i32, %c0_i32_0 : i32, i32, i32
  }
  func.func @transform_2(%arg0: i32, %arg1: i32, %arg2: memref<1xi32, #tpu.memory_space<smem>>) -> (i32, i32) {
    %c0_i32 = arith.constant 0 : i32
    %c0_i32_0 = arith.constant 0 : i32
    %c0_i32_1 = arith.constant 0 : i32
    return %c0_i32, %c0_i32_0 : i32, i32
  }
  func.func @transform_3(%arg0: i32, %arg1: i32, %arg2: memref<1xi32, #tpu.memory_space<smem>>) -> (i32, i32) {
    %c0_i32 = arith.constant 0 : i32
    %c0_i32_0 = arith.constant 0 : i32
    return %arg0, %c0_i32 : i32, i32
  }
}

</mosaic_0001>

<llo_original>
// kernel: tpu_custom_call.1
$region0: #{tpu_custom_call.1}
  #allocation0 [shape = 'u32[]', space=smem, size = 0x4, offset = 0x4, fixed_abs, tag = 'smem constant byte address 0x4 - core index']
  #allocation1 [shape = 'u32[144,128]{1,0:T(1,128)}', space=vmem, size = 0x12000, scoped, tag = 'internal scratch']
  #allocation2 [shape = 'f32[8,128]{1,0:T(8,128)}', space=vmem, size = 0x1000, scoped, tag = 'scratch operand']
  #allocation3 [shape = 's32[1]{0}', space=sflag, size = 0x4, scoped, tag = 'scoped memory for tpu_custom_call.1']
  #allocation4 [shape = 's32[1]{0:T(128)S(6)}', space=smem, size = 0x200, scoped, tag = 'prefetched SMEM operand 0']
  %s0 = inlined_call_operand.<no memory space> [shape: s32[1], index: 0, kind: input, shape index: {}]
  %s1 = inlined_call_operand.hbm [shape: bf16[32,32], index: 1, kind: input, shape index: {}]
  %s2 = inlined_call_operand.vmem [shape: s32[2,1,16], index: 2, kind: input, shape index: {}]
  %s3 = inlined_call_operand.hbm [shape: bf16[32,128], index: 3, kind: input, shape index: {}]
  %s4 = inlined_call_operand.hbm [shape: bf16[8,128], index: 4, kind: output, shape index: {}]
  %s5 = sld [smem:[#allocation0]]
  $region38: #{tpu_custom_call.1} parent=0
    _
  %s7 = ssub.s32 1, %s5
  %s8 = scalar_select 0, %s7, %s5
  %9 = sst [smem:[#allocation4]] %s0
  $region1: #{tpu_custom_call.1} parent=0
    #allocation5 [shape = 'u8[4096]{0}', space=vmem, size = 0x1000, scoped, tag = 'input window, operand 1, single buffered']
    #allocation6 [shape = 's32[1]{0}', space=sflag, size = 0x4, scoped, tag = 'scoped memory for tpu_custom_call.1']
    #allocation7 [shape = 's32[1]{0}', space=sflag, size = 0x4, scoped, tag = 'scoped memory for tpu_custom_call.1']
    #allocation8 [shape = 'u8[8192]{0}', space=vmem, size = 0x2000, scoped, tag = 'input window, operand 3, single buffered']
    #allocation9 [shape = 's32[1]{0}', space=sflag, size = 0x4, scoped, tag = 'scoped memory for tpu_custom_call.1']
    #allocation10 [shape = 'u8[2048]{0}', space=vmem, size = 0x800, scoped, tag = 'output window, operand 0, single buffered']
    %10 = vsyncpa [#allocation6], 0
    %11 = vsyncpa [#allocation9], 0
    %12 = vsyncpa [#allocation7], 0
    // Predicated region
    $region2: #{tpu_custom_call.1} parent=1 // pred_check
      _
    $region3: #{tpu_custom_call.1} parent=1 // pred_check_branch
      %14 = sbr.rel (0) target = $region5
    $region4: #{tpu_custom_call.1} parent=1 // pred_region
      %s15 = sadd.s32 0, 0
      %s16 = sld [smem:[#allocation4 + %s15]]
      %s17 = smul.u32 2, %s16
      %s19 = ssub.s32 128, 128
      %20 = vsyncadd [#allocation6], %s19
      %s21 = smul.addr %s17, 64
      %s22 = scalar_lea.hbm %s1, %s21
      %s23 = sshll.u32 [#allocation5], 4
      %s24 = int_to_ptr.vmem [resolvable:$true] %s23
      %29 = dma.hbm_to_vmem [thread:$0]  %s22, 128, %s24, [#allocation6], 64, 64, 4
    $region5: #{tpu_custom_call.1} parent=1 // pred_fallthru
      _
    // Predicated region
    $region6: #{tpu_custom_call.1} parent=1 // pred_check
      _
    $region7: #{tpu_custom_call.1} parent=1 // pred_check_branch
      %31 = sbr.rel (0) target = $region9
    $region8: #{tpu_custom_call.1} parent=1 // pred_region
      %s32 = sadd.s32 0, 0
      %s33 = sld [smem:[#allocation4 + %s32]]
      %p34 = scmp.lt.s32.totalorder %s33, 1
      %s35 = scalar_select %p34, %s33, 1
      %s36 = scalar_lea.vmem %s2, %s35
      %s37 = sadd.s32 0, 0
      %s38 = sld [smem:[#allocation4 + %s37]]
    $region9: #{tpu_custom_call.1} parent=1 // pred_fallthru
      _
    // Predicated region
    $region10: #{tpu_custom_call.1} parent=1 // pred_check
      _
    $region11: #{tpu_custom_call.1} parent=1 // pred_check_branch
      %40 = sbr.rel (0) target = $region13
    $region12: #{tpu_custom_call.1} parent=1 // pred_region
      %s42 = ssub.s32 256, 256
      %43 = vsyncadd [#allocation9], %s42
      %s44 = sshll.u32 [#allocation8], 4
      %s45 = int_to_ptr.vmem [resolvable:$true] %s44
      %50 = dma.hbm_to_vmem [thread:$0]  %s3, 256, %s45, [#allocation9], 64, 64, 4
    $region13: #{tpu_custom_call.1} parent=1 // pred_fallthru
      _
    // Predicated region
    $region14: #{tpu_custom_call.1} parent=1 // pred_check
      _
    $region15: #{tpu_custom_call.1} parent=1 // pred_check_branch
      %52 = sbr.rel (0) target = $region17
    $region16: #{tpu_custom_call.1} parent=1 // pred_region
      %53 = dma.done [#allocation6], 128
    $region17: #{tpu_custom_call.1} parent=1 // pred_fallthru
      _
    // Predicated region
    $region18: #{tpu_custom_call.1} parent=1 // pred_check
      _
    $region19: #{tpu_custom_call.1} parent=1 // pred_check_branch
      %55 = sbr.rel (0) target = $region21
    $region20: #{tpu_custom_call.1} parent=1 // pred_region
      %56 = dma.done [#allocation9], 256
    $region21: #{tpu_custom_call.1} parent=1 // pred_fallthru
      _
    %s57 = sadd.s32 0, 0
    %s58 = sld [smem:[#allocation4 + %s57]]
    %p59 = scmp.lt.s32.totalorder %s58, 1
    %s60 = scalar_select %p59, %s58, 1
    %s61 = scalar_lea.vmem %s2, %s60
    %s62 = sadd.s32 0, 0
    %s63 = sld [smem:[#allocation4 + %s62]]
    %s64 = smul.u32 2, %s63
    %s65 = sadd.s32 0, 0
    %s66 = sld [smem:[#allocation4 + %s65]]
    %p67 = scmp.lt.s32.totalorder %s66, 1
    %s68 = scalar_select %p67, %s66, 1
    %s69 = scalar_lea.vmem %s2, %s68
    %s70 = sadd.s32 0, 0
    %s71 = sld [smem:[#allocation4 + %s70]]
    %p73 = scmp.eq.s32.totalorder 0, 0
    // Predicated region
    $region22: #{tpu_custom_call.1} parent=1 // pred_check
      %p74 = pneg %p73
    $region23: #{tpu_custom_call.1} parent=1 // pred_check_branch
      %76 = sbr.rel (%p74) target = $region25
    $region24: #{tpu_custom_call.1} parent=1 // pred_region
      %77 = vst [vmem:[#allocation2] sm:$0xff] 0.0
    $region25: #{tpu_custom_call.1} parent=1 // pred_fallthru
      _
    %v78 = vld [vmem:[#allocation5] sm:$0xf]
    %v79 = vld [vmem:[#allocation5 + $0x4] sm:$0xf]
    %v80 = vld [vmem:[#allocation8] sm:$0xf]
    %v81 = vld [vmem:[#allocation8 + $0x4] sm:$0xf]
    %v82 = vld [vmem:[#allocation8 + $0x8] sm:$0xf]
    %v83 = vld [vmem:[#allocation8 + $0xc] sm:$0xf]
    %v86 = vunpack.c.l.b16 %v78
    %v87 = vunpack.c.l.b16 %v79
    %v88 = vpack.c.b16 %v87, %v86
    %v93 = vunpack.c.l.b16 %v80
    %v94 = vunpack.c.l.b16 %v81
    %v95 = vunpack.c.l.b16 %v82
    %v96 = vunpack.c.l.b16 %v83
    %v97 = vpack.c.b16 %v94, %v93
    %v98 = vpack.c.b16 %v96, %v95
    %vm101 = vcmask 261120
    %v103 = vsel %vm101, %v88, 0
    %105 = vmatprep.subr.bf16.mxu0 0
    %106 = vmatpush1.bf16.msra.mxu0 0
    %107 = vmatprep.subr.bf16.mxu0 0
    %108 = vmatpush1.bf16.msra.mxu0 0
    %109 = vmatprep.subr.bf16.mxu0 0
    %110 = vmatpush1.bf16.msra.mxu0 0
    %111 = vmatprep.subr.bf16.mxu0 0
    %112 = vmatpush1.bf16.msra.mxu0 0
    %113 = vmatprep.subr.bf16.mxu0 0
    %114 = vmatpush1.bf16.msra.mxu0 0
    %115 = vmatprep.subr.bf16.mxu0 0
    %116 = vmatpush1.bf16.msra.mxu0 0
    %117 = vmatprep.subr.bf16.mxu0 0
    %118 = vmatpush1.bf16.msra.mxu0 %v98
    %119 = vmatprep.subr.bf16.mxu0 0
    %120 = vmatpush1.bf16.msra.mxu0 %v97
    %121 = vmatprep.subr.bf16.mxu0 0
    %122 = vmatpush2.bf16.msra.mxu0 0
    %123 = vmatprep.subr.bf16.mxu0 0
    %124 = vmatpush2.bf16.msra.mxu0 0
    %125 = vmatprep.subr.bf16.mxu0 0
    %126 = vmatpush2.bf16.msra.mxu0 0
    %127 = vmatprep.subr.bf16.mxu0 0
    %128 = vmatpush2.bf16.msra.mxu0 0
    %129 = vmatprep.subr.bf16.mxu0 0
    %130 = vmatpush2.bf16.msra.mxu0 0
    %131 = vmatprep.subr.bf16.mxu0 0
    %132 = vmatpush2.bf16.msra.mxu0 0
    %133 = vmatprep.subr.bf16.mxu0 0
    %134 = vmatpush2.bf16.msra.mxu0 0
    %135 = vmatprep.subr.bf16.mxu0 0
    %136 = vmatpush2.bf16.msra.mxu0 0
    %137 = vmatprep.mubr.bf16.mxu0 0
    %138 = vmatmul.mubr.bf16.gmra.mxu0 %v103
    %v139 = vpop.f32.mrf.mxu0
    %v140 = vadd.f32 0.0, %v139
    %v141 = vpop.f32.mrf.mxu0
    %v142 = vpop.f32.mrf.mxu0
    %v143 = vadd.f32 0.0, %v142
    %v144 = vpop.f32.mrf.mxu0
    %145 = vdwg.mxu0
    %s146 = smul.u32 0, 8
    %v147 = vlaneseq
    %v148 = vshrl.u32 %v147, 7
    %v149 = vstv %s146
    %v150 = vadd.s32 %v149, %v148
    %v151 = vld [vmem:[%s69] sm:$0x1]
    %v152 = vlaneseq
    %v153 = vshrl.u32 %v152, 7
    %v154 = vsub.s32 0, %v153
    %v155 = vrot.slane %v151, %v154
    %vm156 = vcmp.eq.s32.totalorder %v155, %v150
    %v157 = vsel %vm156, 1, 0
    %v158 = vcvt.s32.f32 %v157
    %v159 = vpack.c.bf16 %v158, %v158
    %v160 = vld [vmem:[#allocation2] sm:$0xff]
    %v161 = vpack.c.bf16 %v143, %v140
    %vm162 = vcmask 130048
    %v164 = vsel %vm162, %v159, 0
    %166 = vmatprep.subr.bf16.mxu0 0
    %167 = vmatpush1.bf16.msra.mxu0 0
    %168 = vmatprep.subr.bf16.mxu0 0
    %169 = vmatpush1.bf16.msra.mxu0 0
    %170 = vmatprep.subr.bf16.mxu0 0
    %171 = vmatpush1.bf16.msra.mxu0 0
    %172 = vmatprep.subr.bf16.mxu0 0
    %173 = vmatpush1.bf16.msra.mxu0 0
    %174 = vmatprep.subr.bf16.mxu0 0
    %175 = vmatpush1.bf16.msra.mxu0 0
    %176 = vmatprep.subr.bf16.mxu0 0
    %177 = vmatpush1.bf16.msra.mxu0 0
    %178 = vmatprep.subr.bf16.mxu0 0
    %179 = vmatpush1.bf16.msra.mxu0 0
    %180 = vmatprep.subr.bf16.mxu0 0
    %181 = vmatpush1.bf16.msra.mxu0 %v161
    %182 = vmatprep.subr.bf16.mxu0 0
    %183 = vmatpush2.bf16.msra.mxu0 0
    %184 = vmatprep.subr.bf16.mxu0 0
    %185 = vmatpush2.bf16.msra.mxu0 0
    %186 = vmatprep.subr.bf16.mxu0 0
    %187 = vmatpush2.bf16.msra.mxu0 0
    %188 = vmatprep.subr.bf16.mxu0 0
    %189 = vmatpush2.bf16.msra.mxu0 0
    %190 = vmatprep.subr.bf16.mxu0 0
    %191 = vmatpush2.bf16.msra.mxu0 0
    %192 = vmatprep.subr.bf16.mxu0 0
    %193 = vmatpush2.bf16.msra.mxu0 0
    %194 = vmatprep.subr.bf16.mxu0 0
    %195 = vmatpush2.bf16.msra.mxu0 0
    %196 = vmatprep.subr.bf16.mxu0 0
    %197 = vmatpush2.bf16.msra.mxu0 0
    %198 = vmatprep.mubr.bf16.mxu0 0
    %199 = vmatmul.mubr.bf16.gmra.mxu0 %v164
    %v200 = vpop.f32.mrf.mxu0
    %v201 = vadd.f32 0.0, %v200
    %v202 = vpop.f32.mrf.mxu0
    %v203 = vpop.f32.mrf.mxu0
    %v204 = vpop.f32.mrf.mxu0
    %205 = vdwg.mxu0
    %v206 = vadd.f32 %v160, %v201
    %207 = vst [vmem:[#allocation2] sm:$0xff] %v206
    // Predicated region
    $region26: #{tpu_custom_call.1} parent=1 // pred_check
      %p208 = pneg %p73
    $region27: #{tpu_custom_call.1} parent=1 // pred_check_branch
      %210 = sbr.rel (%p208) target = $region29
    $region28: #{tpu_custom_call.1} parent=1 // pred_region
      %v211 = vld [vmem:[#allocation2] sm:$0xff]
      %v212 = vpack.c.bf16 %v211, %v211
      %213 = vst [vmem:[#allocation10] sm:$0xf] %v212
    $region29: #{tpu_custom_call.1} parent=1 // pred_fallthru
      _
    // Predicated region
    $region30: #{tpu_custom_call.1} parent=1 // pred_check
      _
    $region31: #{tpu_custom_call.1} parent=1 // pred_check_branch
      %215 = sbr.rel (0) target = $region33
    $region32: #{tpu_custom_call.1} parent=1 // pred_region
      %s217 = ssub.s32 64, 64
      %218 = vsyncadd [#allocation7], %s217
      %s220 = sshll.u32 [#allocation10], 4
      %s221 = int_to_ptr.vmem [resolvable:$true] %s220
      %223 = dma.vmem_to_hbm [thread:$0]  %s221, 64, %s4, [#allocation7]
    $region33: #{tpu_custom_call.1} parent=1 // pred_fallthru
      _
    // Predicated region
    $region34: #{tpu_custom_call.1} parent=1 // pred_check
      _
    $region35: #{tpu_custom_call.1} parent=1 // pred_check_branch
      %225 = sbr.rel (0) target = $region37
    $region36: #{tpu_custom_call.1} parent=1 // pred_region
      %226 = dma.done [#allocation7], 64
    $region37: #{tpu_custom_call.1} parent=1 // pred_fallthru
      _
    %227 = vsyncpa [#allocation6], 1
    %228 = vsyncpa [#allocation9], 1
    %229 = vsyncpa [#allocation7], 1

</llo_original>
